<compile_context>
chip_gen: v7x
topology: tpu7x:2x2x1
jax: 0.10.0
libtpu: 0.0.40
codegen_flags: <defaults>
</compile_context>

<pallas_src>
import functools

import jax
import jax.numpy as jnp
from jax.experimental import pallas as pl
from jax.experimental.pallas import tpu as pltpu


def _round_up(n, m):
    return ((n + m - 1) // m) * m


# ----------------------------- Pallas kernel --------------------------------
def _policy_kernel(x_ref, w1_ref, b1_ref, w2_ref, b2_ref, wh_ref, bh_ref,
                   head_ref):
    # cast x to the weight/matmul dtype in-kernel (VPU cast hides under DMA/MXU)
    x = x_ref[...].astype(w1_ref.dtype)

    # layer 1, actor|critic fused:  (TB, OBS) @ (OBS, 2H), f32 accumulation
    h1 = jnp.dot(x, w1_ref[...], preferred_element_type=jnp.float32) + b1_ref[...]
    h1 = jnp.maximum(h1, 0.0)                              # f32 ReLU on the VPU

    # layer 2, block-diagonal actor|critic:  (TB, 2H) @ (2H, 2H)
    h2 = jnp.dot(h1.astype(w2_ref.dtype), w2_ref[...],
                 preferred_element_type=jnp.float32) + b2_ref[...]
    h2 = jnp.maximum(h2, 0.0)

    # fused heads: [dist logits | value | actor_feat (via identity) | pad]
    #   (TB, 2H) @ (2H, OUT_PAD)  -- the only output store, lane-dense.
    head = jnp.dot(h2.astype(wh_ref.dtype), wh_ref[...],
                   preferred_element_type=jnp.float32) + bh_ref[...]
    head_ref[...] = head.astype(head_ref.dtype)


# ------------------------------- wrapper -------------------------------------
@functools.partial(jax.jit,
                   static_argnames=("hidden_size", "num_logits", "block_b",
                                    "out_dtype"))
def policy_forward(fused, x, *, hidden_size, num_logits, block_b=1024,
                   out_dtype=jnp.float32):
    """Returns (value, actor_features, dist_logits_concat)."""
    B, OBS = x.shape
    H = hidden_size
    A = num_logits
    H2 = 2 * H
    OUT_PAD = fused["wh"].shape[1]

    # --- batch tiling ---------------------------------------------------
    # * rows per tile multiple of 16 (bf16 sublane packing)
    # * aim for >= 2 grid steps so ("parallel",) shards across v7x's 2 TCs
    #   (harmless ~0.35us extra step overhead on v5e/v6e)
    row_mult = 16
    tb = max(row_mult, min(block_b, _round_up(pl.cdiv(B, 2), row_mult)))
    B_pad = _round_up(B, tb)
    xp = x
    if B_pad != B:
        xp = jnp.pad(xp, ((0, B_pad - B), (0, 0)))
    grid = (B_pad // tb,)

    def full_spec(arr):  # whole array resident in VMEM across all grid steps
        return pl.BlockSpec(arr.shape, lambda i, _nd=arr.ndim: (0,) * _nd)

    out_itemsize = jnp.dtype(out_dtype).itemsize
    weight_bytes = sum(fused[k].size * fused[k].dtype.itemsize
                       for k in ("w1", "b1", "w2", "b2", "wh", "bh"))
    flops = 2 * B_pad * (OBS * H2 + H2 * H2 + H2 * OUT_PAD)
    bytes_accessed = (xp.size * xp.dtype.itemsize + weight_bytes
                      + B_pad * OUT_PAD * out_itemsize)

    # explicit VMEM budget: resident weights + double-buffered in/out tiles,
    # 2x headroom, capped under v7x's 64 MiB physical VMEM.
    per_step_bytes = 2 * (tb * OBS * xp.dtype.itemsize
                          + tb * OUT_PAD * out_itemsize)
    vmem_limit = min(max(2 * (weight_bytes + per_step_bytes) + (2 << 20),
                         8 << 20), 48 << 20)

    head_all = pl.pallas_call(
        _policy_kernel,
        out_shape=jax.ShapeDtypeStruct((B_pad, OUT_PAD), out_dtype),
        grid=grid,
        in_specs=[
            pl.BlockSpec((tb, OBS), lambda i: (i, 0)),
            full_spec(fused["w1"]), full_spec(fused["b1"]),
            full_spec(fused["w2"]), full_spec(fused["b2"]),
            full_spec(fused["wh"]), full_spec(fused["bh"]),
        ],
        out_specs=pl.BlockSpec((tb, OUT_PAD), lambda i: (i, 0)),
        compiler_params=pltpu.CompilerParams(
            dimension_semantics=("parallel",),
            vmem_limit_bytes=vmem_limit),
        cost_estimate=pl.CostEstimate(
            flops=flops, transcendentals=0, bytes_accessed=bytes_accessed),
    )(xp, fused["w1"], fused["b1"], fused["w2"], fused["b2"],
      fused["wh"], fused["bh"])

    logits = head_all[:B, :A]
    value = head_all[:B, A:A + 1].astype(jnp.float32)
    actor_feat = head_all[:B, A + 1:A + 1 + H]
    return value, actor_feat, logits


# ----------------------------- parameter init -------------------------------
def _orthogonal(key, out_dim, in_dim, gain=1.0):
    """Orthogonal init (mimics nn.init.orthogonal_), returned transposed to
    (in_dim, out_dim) for x @ W."""
    a = jax.random.normal(key, (max(out_dim, in_dim), min(out_dim, in_dim)),
                          dtype=jnp.float32)
    q, r = jnp.linalg.qr(a)
    q = q * jnp.sign(jnp.diagonal(r))
    if out_dim < in_dim:
        w = q.T[:out_dim, :in_dim]           # (out, in)
    else:
        w = q[:out_dim, :in_dim]             # (out, in)
    return (gain * w).T.astype(jnp.float32)  # (in, out)


def make_policy_params(key, obs_size, hidden_size, action_space):
    n_heads = len(action_space)
    ks = jax.random.split(key, 5 + n_heads)
    g = float(jnp.sqrt(2.0))                 # matches init_ (gain=sqrt(2)) in MLPBase
    params = {
        # actor MLP
        "wa1": _orthogonal(ks[0], hidden_size, obs_size, g),
        "ba1": jnp.zeros((1, hidden_size), jnp.float32),
        "wa2": _orthogonal(ks[1], hidden_size, hidden_size, g),
        "ba2": jnp.zeros((1, hidden_size), jnp.float32),
        # critic MLP
        "wc1": _orthogonal(ks[2], hidden_size, obs_size, g),
        "bc1": jnp.zeros((1, hidden_size), jnp.float32),
        "wc2": _orthogonal(ks[3], hidden_size, hidden_size, g),
        "bc2": jnp.zeros((1, hidden_size), jnp.float32),
        # critic_linear (value head)
        "wcl": _orthogonal(ks[4], 1, hidden_size, g),
        "bcl": jnp.zeros((1, 1), jnp.float32),
    }
    # Categorical dist heads (gain=0.01, bias=0), one unique key per head.
    wds, bds = [], []
    for i, n_act in enumerate(action_space):
        wds.append(_orthogonal(ks[5 + i], n_act, hidden_size, 0.01))
        bds.append(jnp.zeros((1, n_act), jnp.float32))
    params["wd"] = jnp.concatenate(wds, axis=1)
    params["bd"] = jnp.concatenate(bds, axis=1)
    return params


def fuse_policy_params(params, *, dtype=jnp.float32):
    """Build the fused / lane-dense weights the kernel consumes.

    w1 = [wa1 | wc1]                                   (OBS, 2H)
    w2 = [[wa2, 0], [0, wc2]]                          (2H, 2H) block diag
    wh = [[wd, 0, I, 0], [0, wcl, 0, 0]] padded to     (2H, OUT_PAD)
         -> head output slab is [logits | value | actor_feat | pad]
    Biases stay f32; bcl is folded into bh. bf16 is valid on v5e/v6e/v7x.
    """
    H = params["wa2"].shape[1]
    A = params["wd"].shape[1]
    out_pad = _round_up(A + 1 + H, 128)

    w1 = jnp.concatenate([params["wa1"], params["wc1"]], axis=1)
    b1 = jnp.concatenate([params["ba1"], params["bc1"]], axis=1)

    w2 = jnp.zeros((2 * H, 2 * H), jnp.float32)
    w2 = w2.at[:H, :H].set(params["wa2"]).at[H:, H:].set(params["wc2"])
    b2 = jnp.concatenate([params["ba2"], params["bc2"]], axis=1)

    wh = jnp.zeros((2 * H, out_pad), jnp.float32)
    wh = wh.at[:H, :A].set(params["wd"])                      # logits
    wh = wh.at[H:, A:A + 1].set(params["wcl"])                # value
    wh = wh.at[:H, A + 1:A + 1 + H].set(jnp.eye(H))           # actor_feat copy
    bh = jnp.zeros((1, out_pad), jnp.float32)
    bh = bh.at[:, :A].set(params["bd"]).at[:, A:A + 1].set(params["bcl"])

    return {
        "w1": w1.astype(dtype), "b1": b1.astype(jnp.float32),
        "w2": w2.astype(dtype), "b2": b2.astype(jnp.float32),
        "wh": wh.astype(dtype), "bh": bh.astype(jnp.float32),
    }


# pure-JAX reference (un-fused) for sanity checking
def _reference(params, x):
    relu = lambda v: jnp.maximum(v, 0.0)
    ha = relu(x @ params["wa1"] + params["ba1"])
    ha = relu(ha @ params["wa2"] + params["ba2"])
    hc = relu(x @ params["wc1"] + params["bc1"])
    hc = relu(hc @ params["wc2"] + params["bc2"])
    value = hc @ params["wcl"] + params["bcl"]
    logits = ha @ params["wd"] + params["bd"]
    return value, ha, logits


if __name__ == "__main__":
    key = jax.random.PRNGKey(0)
    k_param, k_x = jax.random.split(key)

    B, OBS, HID = 8, 16, 64
    ACTION_SPACE = [5, 3]        # two discrete Categorical heads
    A = sum(ACTION_SPACE)

    params = make_policy_params(k_param, OBS, HID, ACTION_SPACE)
    x = jax.random.normal(k_x, (B, OBS), dtype=jnp.float32)

    v_ref, a_ref, l_ref = _reference(params, x)

    # f32 weight / f32 output path (parity vs reference)
    fused_f32 = fuse_policy_params(params, dtype=jnp.float32)
    value, actor_feat, logits = policy_forward(
        fused_f32, x, hidden_size=HID, num_logits=A)
    jax.block_until_ready((value, actor_feat, logits))

    assert value.shape == (B, 1) and actor_feat.shape == (B, HID) and logits.shape == (B, A)
    assert jnp.allclose(value, v_ref, atol=1e-3)
    assert jnp.allclose(actor_feat, a_ref, atol=1e-3)
    assert jnp.allclose(logits, l_ref, atol=1e-3)

    # bf16 weights + bf16 outputs (MXU bf16-native on v5e/v6e/v7x; f32 accum).
    # Halves weight DMA and output writeback bytes.
    fused_bf16 = fuse_policy_params(params, dtype=jnp.bfloat16)
    v16, a16, l16 = policy_forward(fused_bf16, x, hidden_size=HID, num_logits=A,
                                   out_dtype=jnp.bfloat16)
    jax.block_until_ready((v16, a16, l16))
    assert jnp.allclose(v16, v_ref, atol=0.3, rtol=0.05)
    assert jnp.allclose(a16.astype(jnp.float32), a_ref, atol=0.3, rtol=0.05)
    assert jnp.allclose(l16.astype(jnp.float32), l_ref, atol=0.3, rtol=0.05)

    # larger batch exercises the multi-step grid (>=2 steps -> megacore on v7x)
    xb = jax.random.normal(jax.random.PRNGKey(1), (300, OBS), dtype=jnp.float32)
    vb, ab, lb = policy_forward(fused_f32, xb, hidden_size=HID, num_logits=A)
    jax.block_until_ready((vb, ab, lb))
    vb_r, ab_r, lb_r = _reference(params, xb)
    assert jnp.allclose(vb, vb_r, atol=1e-3)
    assert jnp.allclose(ab, ab_r, atol=1e-3)
    assert jnp.allclose(lb, lb_r, atol=1e-3)

    # TODO(synk): GRU (recurrent=True) and MHAT2 attention branches of NNBase,
    # and Categorical sampling / log_probs / entropy in Policy.act /
    # evaluate_actions, are control-flow glue left outside the kernel.

    print("KERNEL_OK")
</pallas_src>

<mosaic_0001>
module attributes {stable_mosaic.version = 11 : i64} {
  func.func @_policy_kernel(%arg0: i32, %arg1: memref<16x16xf32, #tpu.memory_space<vmem>>, %arg2: memref<16x128xf32, #tpu.memory_space<vmem>>, %arg3: memref<1x128xf32, #tpu.memory_space<vmem>>, %arg4: memref<128x128xf32, #tpu.memory_space<vmem>>, %arg5: memref<1x128xf32, #tpu.memory_space<vmem>>, %arg6: memref<128x128xf32, #tpu.memory_space<vmem>>, %arg7: memref<1x128xf32, #tpu.memory_space<vmem>>, %arg8: memref<16x128xf32, #tpu.memory_space<vmem>>) attributes {dimension_semantics = [#tpu.dimension_semantics<parallel>], iteration_bounds = array<i64: 1>, scalar_prefetch = 0 : i64, scratch_operands = 0 : i64, tpu.core_type = #tpu.core_type<tc>, window_params = [{transform_indices = @transform_0, window_bounds = array<i64: 16, 16>}, {pipeline_mode = #tpu.pipeline_mode<synchronous>, transform_indices = @transform_1, window_bounds = array<i64: 16, 128>}, {pipeline_mode = #tpu.pipeline_mode<synchronous>, transform_indices = @transform_2, window_bounds = array<i64: 1, 128>}, {pipeline_mode = #tpu.pipeline_mode<synchronous>, transform_indices = @transform_3, window_bounds = array<i64: 128, 128>}, {pipeline_mode = #tpu.pipeline_mode<synchronous>, transform_indices = @transform_4, window_bounds = array<i64: 1, 128>}, {pipeline_mode = #tpu.pipeline_mode<synchronous>, transform_indices = @transform_5, window_bounds = array<i64: 128, 128>}, {pipeline_mode = #tpu.pipeline_mode<synchronous>, transform_indices = @transform_6, window_bounds = array<i64: 1, 128>}, {transform_indices = @transform_7, window_bounds = array<i64: 16, 128>}]} {
    %c0 = arith.constant 0 : index
    %c0_0 = arith.constant 0 : index
    %0 = vector.load %arg1[%c0, %c0_0] : memref<16x16xf32, #tpu.memory_space<vmem>>, vector<16x16xf32>
    %c0_1 = arith.constant 0 : index
    %c0_2 = arith.constant 0 : index
    %1 = vector.load %arg2[%c0_1, %c0_2] : memref<16x128xf32, #tpu.memory_space<vmem>>, vector<16x128xf32>
    %cst = arith.constant dense<0.000000e+00> : vector<16x128xf32>
    %2 = tpu.matmul %0, %1, %cst {dimension_numbers = #tpu.dot_dimension_numbers<[1], [0], [0], [1], [0, 0, 1, 1], [], []>} : vector<16x16xf32>, vector<16x128xf32>, vector<16x128xf32> -> vector<16x128xf32>
    %c0_3 = arith.constant 0 : index
    %c0_4 = arith.constant 0 : index
    %3 = vector.load %arg3[%c0_3, %c0_4] : memref<1x128xf32, #tpu.memory_space<vmem>>, vector<1x128xf32>
    %4 = vector.broadcast %3 : vector<1x128xf32> to vector<16x128xf32>
    %5 = arith.addf %2, %4 : vector<16x128xf32>
    %cst_5 = arith.constant 0.000000e+00 : f32
    %6 = vector.broadcast %cst_5 : f32 to vector<16x128xf32>
    %7 = arith.maximumf %5, %6 : vector<16x128xf32>
    %c0_6 = arith.constant 0 : index
    %c0_7 = arith.constant 0 : index
    %8 = vector.load %arg4[%c0_6, %c0_7] : memref<128x128xf32, #tpu.memory_space<vmem>>, vector<128x128xf32>
    %cst_8 = arith.constant dense<0.000000e+00> : vector<16x128xf32>
    %9 = tpu.matmul %7, %8, %cst_8 {dimension_numbers = #tpu.dot_dimension_numbers<[1], [0], [0], [1], [0, 0, 1, 1], [], []>} : vector<16x128xf32>, vector<128x128xf32>, vector<16x128xf32> -> vector<16x128xf32>
    %c0_9 = arith.constant 0 : index
    %c0_10 = arith.constant 0 : index
    %10 = vector.load %arg5[%c0_9, %c0_10] : memref<1x128xf32, #tpu.memory_space<vmem>>, vector<1x128xf32>
    %11 = vector.broadcast %10 : vector<1x128xf32> to vector<16x128xf32>
    %12 = arith.addf %9, %11 : vector<16x128xf32>
    %cst_11 = arith.constant 0.000000e+00 : f32
    %13 = vector.broadcast %cst_11 : f32 to vector<16x128xf32>
    %14 = arith.maximumf %12, %13 : vector<16x128xf32>
    %c0_12 = arith.constant 0 : index
    %c0_13 = arith.constant 0 : index
    %15 = vector.load %arg6[%c0_12, %c0_13] : memref<128x128xf32, #tpu.memory_space<vmem>>, vector<128x128xf32>
    %cst_14 = arith.constant dense<0.000000e+00> : vector<16x128xf32>
    %16 = tpu.matmul %14, %15, %cst_14 {dimension_numbers = #tpu.dot_dimension_numbers<[1], [0], [0], [1], [0, 0, 1, 1], [], []>} : vector<16x128xf32>, vector<128x128xf32>, vector<16x128xf32> -> vector<16x128xf32>
    %c0_15 = arith.constant 0 : index
    %c0_16 = arith.constant 0 : index
    %17 = vector.load %arg7[%c0_15, %c0_16] : memref<1x128xf32, #tpu.memory_space<vmem>>, vector<1x128xf32>
    %18 = vector.broadcast %17 : vector<1x128xf32> to vector<16x128xf32>
    %19 = arith.addf %16, %18 : vector<16x128xf32>
    %c0_17 = arith.constant 0 : index
    %c0_18 = arith.constant 0 : index
    %20 = vector.load %arg8[%c0_17, %c0_18] : memref<16x128xf32, #tpu.memory_space<vmem>>, vector<16x128xf32>
    tpu.vector_store %arg8[%c0_17, %c0_18], %19 {strides = array<i32>} : memref<16x128xf32, #tpu.memory_space<vmem>>, vector<16x128xf32>,
    return
  }
  func.func @transform_0(%arg0: i32) -> (i32, i32) {
    %c0_i32 = arith.constant 0 : i32
    %c0_i32_0 = arith.constant 0 : i32
    return %arg0, %c0_i32 : i32, i32
  }
  func.func @transform_1(%arg0: i32) -> (i32, i32) {
    %c0_i32 = arith.constant 0 : i32
    %c0_i32_0 = arith.constant 0 : i32
    %c0_i32_1 = arith.constant 0 : i32
    return %c0_i32, %c0_i32_0 : i32, i32
  }
  func.func @transform_2(%arg0: i32) -> (i32, i32) {
    %c0_i32 = arith.constant 0 : i32
    %c0_i32_0 = arith.constant 0 : i32
    %c0_i32_1 = arith.constant 0 : i32
    return %c0_i32, %c0_i32_0 : i32, i32
  }
  func.func @transform_3(%arg0: i32) -> (i32, i32) {
    %c0_i32 = arith.constant 0 : i32
    %c0_i32_0 = arith.constant 0 : i32
    %c0_i32_1 = arith.constant 0 : i32
    return %c0_i32, %c0_i32_0 : i32, i32
  }
  func.func @transform_4(%arg0: i32) -> (i32, i32) {
    %c0_i32 = arith.constant 0 : i32
    %c0_i32_0 = arith.constant 0 : i32
    %c0_i32_1 = arith.constant 0 : i32
    return %c0_i32, %c0_i32_0 : i32, i32
  }
  func.func @transform_5(%arg0: i32) -> (i32, i32) {
    %c0_i32 = arith.constant 0 : i32
    %c0_i32_0 = arith.constant 0 : i32
    %c0_i32_1 = arith.constant 0 : i32
    return %c0_i32, %c0_i32_0 : i32, i32
  }
  func.func @transform_6(%arg0: i32) -> (i32, i32) {
    %c0_i32 = arith.constant 0 : i32
    %c0_i32_0 = arith.constant 0 : i32
    %c0_i32_1 = arith.constant 0 : i32
    return %c0_i32, %c0_i32_0 : i32, i32
  }
  func.func @transform_7(%arg0: i32) -> (i32, i32) {
    %c0_i32 = arith.constant 0 : i32
    %c0_i32_0 = arith.constant 0 : i32
    return %arg0, %c0_i32 : i32, i32
  }
}

</mosaic_0001>

<llo_original>
// kernel: policy_forward.1
$region0: #{policy_forward.1}
  #allocation0 [shape = 'u32[]', space=smem, size = 0x4, offset = 0x4, fixed_abs, tag = 'smem constant byte address 0x4 - core index']
  #allocation1 [shape = 'u32[144,128]{1,0:T(1,128)}', space=vmem, size = 0x12000, scoped, tag = 'internal scratch']
  %s0 = inlined_call_operand.vmem [shape: f32[16,16], index: 0, kind: input, shape index: {}]
  %s1 = inlined_call_operand.vmem [shape: f32[16,128], index: 1, kind: input, shape index: {}]
  %s2 = inlined_call_operand.vmem [shape: f32[1,128], index: 2, kind: input, shape index: {}]
  %s3 = inlined_call_operand.hbm [shape: f32[128,128], index: 3, kind: input, shape index: {}]
  %s4 = inlined_call_operand.vmem [shape: f32[1,128], index: 4, kind: input, shape index: {}]
  %s5 = inlined_call_operand.hbm [shape: f32[128,128], index: 5, kind: input, shape index: {}]
  %s6 = inlined_call_operand.vmem [shape: f32[1,128], index: 6, kind: input, shape index: {}]
  %s7 = inlined_call_operand.vmem [shape: f32[16,128], index: 7, kind: output, shape index: {}]
  %s8 = sld [smem:[#allocation0]]
  $region46: #{policy_forward.1} parent=0
    _
  %s10 = ssub.s32 1, %s8
  %s11 = scalar_select 0, %s10, %s8
  $region1: #{policy_forward.1} parent=0
    #allocation2 [shape = 'u8[65536]{0}', space=vmem, size = 0x10000, scoped, tag = 'input window, operand 3, single buffered']
    #allocation3 [shape = 's32[1]{0}', space=sflag, size = 0x4, scoped, tag = 'scoped memory for policy_forward.1']
    #allocation4 [shape = 'u8[65536]{0}', space=vmem, size = 0x10000, scoped, tag = 'input window, operand 5, single buffered']
    #allocation5 [shape = 's32[1]{0}', space=sflag, size = 0x4, scoped, tag = 'scoped memory for policy_forward.1']
    %12 = vsyncpa [#allocation3], 0
    %13 = vsyncpa [#allocation5], 0
    // Predicated region
    $region2: #{policy_forward.1} parent=1 // pred_check
      _
    $region3: #{policy_forward.1} parent=1 // pred_check_branch
      %15 = sbr.rel (0) target = $region5
    $region4: #{policy_forward.1} parent=1 // pred_region
      _
    $region5: #{policy_forward.1} parent=1 // pred_fallthru
      _
    // Predicated region
    $region6: #{policy_forward.1} parent=1 // pred_check
      _
    $region7: #{policy_forward.1} parent=1 // pred_check_branch
      %17 = sbr.rel (0) target = $region9
    $region8: #{policy_forward.1} parent=1 // pred_region
      _
    $region9: #{policy_forward.1} parent=1 // pred_fallthru
      _
    // Predicated region
    $region10: #{policy_forward.1} parent=1 // pred_check
      _
    $region11: #{policy_forward.1} parent=1 // pred_check_branch
      %19 = sbr.rel (0) target = $region13
    $region12: #{policy_forward.1} parent=1 // pred_region
      _
    $region13: #{policy_forward.1} parent=1 // pred_fallthru
      _
    // Predicated region
    $region14: #{policy_forward.1} parent=1 // pred_check
      _
    $region15: #{policy_forward.1} parent=1 // pred_check_branch
      %21 = sbr.rel (0) target = $region17
    $region16: #{policy_forward.1} parent=1 // pred_region
      %s23 = ssub.s32 2048, 2048
      %24 = vsyncadd [#allocation3], %s23
      %s25 = sshll.u32 [#allocation2], 4
      %s26 = int_to_ptr.vmem [resolvable:$true] %s25
      %31 = dma.hbm_to_vmem [thread:$0]  %s3, 2048, %s26, [#allocation3], 128, 128, 8
    $region17: #{policy_forward.1} parent=1 // pred_fallthru
      _
    // Predicated region
    $region18: #{policy_forward.1} parent=1 // pred_check
      _
    $region19: #{policy_forward.1} parent=1 // pred_check_branch
      %33 = sbr.rel (0) target = $region21
    $region20: #{policy_forward.1} parent=1 // pred_region
      _
    $region21: #{policy_forward.1} parent=1 // pred_fallthru
      _
    // Predicated region
    $region22: #{policy_forward.1} parent=1 // pred_check
      _
    $region23: #{policy_forward.1} parent=1 // pred_check_branch
      %35 = sbr.rel (0) target = $region25
    $region24: #{policy_forward.1} parent=1 // pred_region
      %s37 = ssub.s32 2048, 2048
      %38 = vsyncadd [#allocation5], %s37
      %s39 = sshll.u32 [#allocation4], 4
      %s40 = int_to_ptr.vmem [resolvable:$true] %s39
      %45 = dma.hbm_to_vmem [thread:$0]  %s5, 2048, %s40, [#allocation5], 128, 128, 8
    $region25: #{policy_forward.1} parent=1 // pred_fallthru
      _
    // Predicated region
    $region26: #{policy_forward.1} parent=1 // pred_check
      _
    $region27: #{policy_forward.1} parent=1 // pred_check_branch
      %47 = sbr.rel (0) target = $region29
    $region28: #{policy_forward.1} parent=1 // pred_region
      _
    $region29: #{policy_forward.1} parent=1 // pred_fallthru
      _
    // Predicated region
    $region30: #{policy_forward.1} parent=1 // pred_check
      _
    $region31: #{policy_forward.1} parent=1 // pred_check_branch
      %49 = sbr.rel (0) target = $region33
    $region32: #{policy_forward.1} parent=1 // pred_region
      %50 = dma.done [#allocation3], 2048
    $region33: #{policy_forward.1} parent=1 // pred_fallthru
      _
    // Predicated region
    $region34: #{policy_forward.1} parent=1 // pred_check
      _
    $region35: #{policy_forward.1} parent=1 // pred_check_branch
      %52 = sbr.rel (0) target = $region37
    $region36: #{policy_forward.1} parent=1 // pred_region
      %53 = dma.done [#allocation5], 2048
    $region37: #{policy_forward.1} parent=1 // pred_fallthru
      _
    %v54 = vld [vmem:[%s0] sm:$0xff]
    %v55 = vld [vmem:[%s0 + $0x8] sm:$0xff]
    %v56 = vld [vmem:[%s1] sm:$0xff]
    %v57 = vld [vmem:[%s1 + $0x8] sm:$0xff]
    %v58 = vld [vmem:[%s2] sm:$0x1]
    %v60 = vlaneseq
    %v61 = vshrl.u32 %v60, 7
    %v62 = vsub.s32 0, %v61
    %v63 = vrot.slane %v58, %v62
    %vm65 = vcmask 130048
    %v67 = vsel %vm65, %v54, 0
    %v70 = vsel %vm65, %v55, 0
    %72 = vmatprep.subr.mxu0 0.0
    %73 = vmatpush1.msra.mxu0 %v56
    %74 = vmatprep.subr.mxu0 0.0
    %75 = vmatpush1.msra.mxu0 %v57
    %76 = vmatprep.subr.mxu0 0.0
    %77 = vmatpush1.msra.mxu0 0.0
    %78 = vmatprep.subr.mxu0 0.0
    %79 = vmatpush1.msra.mxu0 0.0
    %80 = vmatprep.subr.mxu0 0.0
    %81 = vmatpush1.msra.mxu0 0.0
    %82 = vmatprep.subr.mxu0 0.0
    %83 = vmatpush1.msra.mxu0 0.0
    %84 = vmatprep.subr.mxu0 0.0
    %85 = vmatpush1.msra.mxu0 0.0
    %86 = vmatprep.subr.mxu0 0.0
    %87 = vmatpush1.msra.mxu0 0.0
    %88 = vmatprep.subr.mxu0 0.0
    %89 = vmatpush1.msra.mxu0 0.0
    %90 = vmatprep.subr.mxu0 0.0
    %91 = vmatpush1.msra.mxu0 0.0
    %92 = vmatprep.subr.mxu0 0.0
    %93 = vmatpush1.msra.mxu0 0.0
    %94 = vmatprep.subr.mxu0 0.0
    %95 = vmatpush1.msra.mxu0 0.0
    %96 = vmatprep.subr.mxu0 0.0
    %97 = vmatpush1.msra.mxu0 0.0
    %98 = vmatprep.subr.mxu0 0.0
    %99 = vmatpush1.msra.mxu0 0.0
    %100 = vmatprep.subr.mxu0 0.0
    %101 = vmatpush1.msra.mxu0 0.0
    %102 = vmatprep.subr.mxu0 0.0
    %103 = vmatpush1.msra.mxu0 0.0
    %104 = vmatprep.subr.mxu0 0.0
    %105 = vmatpush1.msra.mxu0 0.0
    %106 = vmatprep.subr.mxu0 0.0
    %107 = vmatpush1.msra.mxu0 0.0
    %108 = vmatprep.subr.mxu0 0.0
    %109 = vmatpush1.msra.mxu0 0.0
    %110 = vmatprep.subr.mxu0 0.0
    %111 = vmatpush1.msra.mxu0 0.0
    %112 = vmatprep.subr.mxu0 0.0
    %113 = vmatpush1.msra.mxu0 0.0
    %114 = vmatprep.subr.mxu0 0.0
    %115 = vmatpush1.msra.mxu0 0.0
    %116 = vmatprep.subr.mxu0 0.0
    %117 = vmatpush1.msra.mxu0 0.0
    %118 = vmatprep.subr.mxu0 0.0
    %119 = vmatpush1.msra.mxu0 0.0
    %120 = vmatprep.subr.mxu0 0.0
    %121 = vmatpush1.msra.mxu0 0.0
    %122 = vmatprep.subr.mxu0 0.0
    %123 = vmatpush1.msra.mxu0 0.0
    %124 = vmatprep.subr.mxu0 0.0
    %125 = vmatpush1.msra.mxu0 0.0
    %126 = vmatprep.subr.mxu0 0.0
    %127 = vmatpush1.msra.mxu0 0.0
    %128 = vmatprep.subr.mxu0 0.0
    %129 = vmatpush1.msra.mxu0 0.0
    %130 = vmatprep.subr.mxu0 0.0
    %131 = vmatpush1.msra.mxu0 0.0
    %132 = vmatprep.subr.mxu0 0.0
    %133 = vmatpush1.msra.mxu0 0.0
    %134 = vmatprep.subr.mxu0 0.0
    %135 = vmatpush1.msra.mxu0 0.0
    %136 = vmatprep.mubr.f32.mxu0 0.0
    %137 = vmatmul.mubr.f32.gmra.mrb[0].mxu0 %v67
    %v138 = vpop.f32.mrb[0].mxu0
    %v139 = vadd.f32 %v63, %v138
    %v140 = vpop.f32.mrb[0].mxu0
    %141 = vmatprep.mubr.f32.mxu0 0.0
    %142 = vmatmul.mubr.f32.gmra.mrb[0].mxu0 %v70
    %v143 = vpop.f32.mrb[0].mxu0
    %v144 = vadd.f32 %v63, %v143
    %v145 = vpop.f32.mrb[0].mxu0
    %146 = vdwg.mxu0
    %v147 = vmax.f32 %v139, 0.0
    %v148 = vmax.f32 %v144, 0.0
    %v149 = vld [vmem:[#allocation2] sm:$0xff]
    %v150 = vld [vmem:[#allocation2 + $0x8] sm:$0xff]
    %v151 = vld [vmem:[#allocation2 + $0x10] sm:$0xff]
    %v152 = vld [vmem:[#allocation2 + $0x18] sm:$0xff]
    %v153 = vld [vmem:[#allocation2 + $0x20] sm:$0xff]
    %v154 = vld [vmem:[#allocation2 + $0x28] sm:$0xff]
    %v155 = vld [vmem:[#allocation2 + $0x30] sm:$0xff]
    %v156 = vld [vmem:[#allocation2 + $0x38] sm:$0xff]
    %v157 = vld [vmem:[#allocation2 + $0x40] sm:$0xff]
    %v158 = vld [vmem:[#allocation2 + $0x48] sm:$0xff]
    %v159 = vld [vmem:[#allocation2 + $0x50] sm:$0xff]
    %v160 = vld [vmem:[#allocation2 + $0x58] sm:$0xff]
    %v161 = vld [vmem:[#allocation2 + $0x60] sm:$0xff]
    %v162 = vld [vmem:[#allocation2 + $0x68] sm:$0xff]
    %v163 = vld [vmem:[#allocation2 + $0x70] sm:$0xff]
    %v164 = vld [vmem:[#allocation2 + $0x78] sm:$0xff]
    %v165 = vld [vmem:[%s4] sm:$0x1]
    %v167 = vlaneseq
    %v168 = vshrl.u32 %v167, 7
    %v169 = vsub.s32 0, %v168
    %v170 = vrot.slane %v165, %v169
    %172 = vmatprep.subr.mxu0 0.0
    %173 = vmatpush1.msra.mxu0 %v149
    %174 = vmatprep.subr.mxu0 0.0
    %175 = vmatpush1.msra.mxu0 %v150
    %176 = vmatprep.subr.mxu0 0.0
    %177 = vmatpush1.msra.mxu0 %v151
    %178 = vmatprep.subr.mxu0 0.0
    %179 = vmatpush1.msra.mxu0 %v152
    %180 = vmatprep.subr.mxu0 0.0
    %181 = vmatpush1.msra.mxu0 %v153
    %182 = vmatprep.subr.mxu0 0.0
    %183 = vmatpush1.msra.mxu0 %v154
    %184 = vmatprep.subr.mxu0 0.0
    %185 = vmatpush1.msra.mxu0 %v155
    %186 = vmatprep.subr.mxu0 0.0
    %187 = vmatpush1.msra.mxu0 %v156
    %188 = vmatprep.subr.mxu0 0.0
    %189 = vmatpush1.msra.mxu0 %v157
    %190 = vmatprep.subr.mxu0 0.0
    %191 = vmatpush1.msra.mxu0 %v158
    %192 = vmatprep.subr.mxu0 0.0
    %193 = vmatpush1.msra.mxu0 %v159
    %194 = vmatprep.subr.mxu0 0.0
    %195 = vmatpush1.msra.mxu0 %v160
    %196 = vmatprep.subr.mxu0 0.0
    %197 = vmatpush1.msra.mxu0 %v161
    %198 = vmatprep.subr.mxu0 0.0
    %199 = vmatpush1.msra.mxu0 %v162
    %200 = vmatprep.subr.mxu0 0.0
    %201 = vmatpush1.msra.mxu0 %v163
    %202 = vmatprep.subr.mxu0 0.0
    %203 = vmatpush1.msra.mxu0 %v164
    %204 = vmatprep.subr.mxu0 0.0
    %205 = vmatpush1.msra.mxu0 0.0
    %206 = vmatprep.subr.mxu0 0.0
    %207 = vmatpush1.msra.mxu0 0.0
    %208 = vmatprep.subr.mxu0 0.0
    %209 = vmatpush1.msra.mxu0 0.0
    %210 = vmatprep.subr.mxu0 0.0
    %211 = vmatpush1.msra.mxu0 0.0
    %212 = vmatprep.subr.mxu0 0.0
    %213 = vmatpush1.msra.mxu0 0.0
    %214 = vmatprep.subr.mxu0 0.0
    %215 = vmatpush1.msra.mxu0 0.0
    %216 = vmatprep.subr.mxu0 0.0
    %217 = vmatpush1.msra.mxu0 0.0
    %218 = vmatprep.subr.mxu0 0.0
    %219 = vmatpush1.msra.mxu0 0.0
    %220 = vmatprep.subr.mxu0 0.0
    %221 = vmatpush1.msra.mxu0 0.0
    %222 = vmatprep.subr.mxu0 0.0
    %223 = vmatpush1.msra.mxu0 0.0
    %224 = vmatprep.subr.mxu0 0.0
    %225 = vmatpush1.msra.mxu0 0.0
    %226 = vmatprep.subr.mxu0 0.0
    %227 = vmatpush1.msra.mxu0 0.0
    %228 = vmatprep.subr.mxu0 0.0
    %229 = vmatpush1.msra.mxu0 0.0
    %230 = vmatprep.subr.mxu0 0.0
    %231 = vmatpush1.msra.mxu0 0.0
    %232 = vmatprep.subr.mxu0 0.0
    %233 = vmatpush1.msra.mxu0 0.0
    %234 = vmatprep.subr.mxu0 0.0
    %235 = vmatpush1.msra.mxu0 0.0
    %236 = vmatprep.mubr.f32.mxu0 0.0
    %237 = vmatmul.mubr.f32.gmra.mrb[0].mxu0 %v147
    %v238 = vpop.f32.mrb[0].mxu0
    %v239 = vadd.f32 %v170, %v238
    %v240 = vpop.f32.mrb[0].mxu0
    %241 = vmatprep.mubr.f32.mxu0 0.0
    %242 = vmatmul.mubr.f32.gmra.mrb[0].mxu0 %v148
    %v243 = vpop.f32.mrb[0].mxu0
    %v244 = vadd.f32 %v170, %v243
    %v245 = vpop.f32.mrb[0].mxu0
    %246 = vdwg.mxu0
    %v247 = vmax.f32 %v239, 0.0
    %v248 = vmax.f32 %v244, 0.0
    %v249 = vld [vmem:[#allocation4] sm:$0xff]
    %v250 = vld [vmem:[#allocation4 + $0x8] sm:$0xff]
    %v251 = vld [vmem:[#allocation4 + $0x10] sm:$0xff]
    %v252 = vld [vmem:[#allocation4 + $0x18] sm:$0xff]
    %v253 = vld [vmem:[#allocation4 + $0x20] sm:$0xff]
    %v254 = vld [vmem:[#allocation4 + $0x28] sm:$0xff]
    %v255 = vld [vmem:[#allocation4 + $0x30] sm:$0xff]
    %v256 = vld [vmem:[#allocation4 + $0x38] sm:$0xff]
    %v257 = vld [vmem:[#allocation4 + $0x40] sm:$0xff]
    %v258 = vld [vmem:[#allocation4 + $0x48] sm:$0xff]
    %v259 = vld [vmem:[#allocation4 + $0x50] sm:$0xff]
    %v260 = vld [vmem:[#allocation4 + $0x58] sm:$0xff]
    %v261 = vld [vmem:[#allocation4 + $0x60] sm:$0xff]
    %v262 = vld [vmem:[#allocation4 + $0x68] sm:$0xff]
    %v263 = vld [vmem:[#allocation4 + $0x70] sm:$0xff]
    %v264 = vld [vmem:[#allocation4 + $0x78] sm:$0xff]
    %v265 = vld [vmem:[%s6] sm:$0x1]
    %v267 = vlaneseq
    %v268 = vshrl.u32 %v267, 7
    %v269 = vsub.s32 0, %v268
    %v270 = vrot.slane %v265, %v269
    %272 = vmatprep.subr.mxu0 0.0
    %273 = vmatpush1.msra.mxu0 %v249
    %274 = vmatprep.subr.mxu0 0.0
    %275 = vmatpush1.msra.mxu0 %v250
    %276 = vmatprep.subr.mxu0 0.0
    %277 = vmatpush1.msra.mxu0 %v251
    %278 = vmatprep.subr.mxu0 0.0
    %279 = vmatpush1.msra.mxu0 %v252
    %280 = vmatprep.subr.mxu0 0.0
    %281 = vmatpush1.msra.mxu0 %v253
    %282 = vmatprep.subr.mxu0 0.0
    %283 = vmatpush1.msra.mxu0 %v254
    %284 = vmatprep.subr.mxu0 0.0
    %285 = vmatpush1.msra.mxu0 %v255
    %286 = vmatprep.subr.mxu0 0.0
    %287 = vmatpush1.msra.mxu0 %v256
    %288 = vmatprep.subr.mxu0 0.0
    %289 = vmatpush1.msra.mxu0 %v257
    %290 = vmatprep.subr.mxu0 0.0
    %291 = vmatpush1.msra.mxu0 %v258
    %292 = vmatprep.subr.mxu0 0.0
    %293 = vmatpush1.msra.mxu0 %v259
    %294 = vmatprep.subr.mxu0 0.0
    %295 = vmatpush1.msra.mxu0 %v260
    %296 = vmatprep.subr.mxu0 0.0
    %297 = vmatpush1.msra.mxu0 %v261
    %298 = vmatprep.subr.mxu0 0.0
    %299 = vmatpush1.msra.mxu0 %v262
    %300 = vmatprep.subr.mxu0 0.0
    %301 = vmatpush1.msra.mxu0 %v263
    %302 = vmatprep.subr.mxu0 0.0
    %303 = vmatpush1.msra.mxu0 %v264
    %304 = vmatprep.subr.mxu0 0.0
    %305 = vmatpush1.msra.mxu0 0.0
    %306 = vmatprep.subr.mxu0 0.0
    %307 = vmatpush1.msra.mxu0 0.0
    %308 = vmatprep.subr.mxu0 0.0
    %309 = vmatpush1.msra.mxu0 0.0
    %310 = vmatprep.subr.mxu0 0.0
    %311 = vmatpush1.msra.mxu0 0.0
    %312 = vmatprep.subr.mxu0 0.0
    %313 = vmatpush1.msra.mxu0 0.0
    %314 = vmatprep.subr.mxu0 0.0
    %315 = vmatpush1.msra.mxu0 0.0
    %316 = vmatprep.subr.mxu0 0.0
    %317 = vmatpush1.msra.mxu0 0.0
    %318 = vmatprep.subr.mxu0 0.0
    %319 = vmatpush1.msra.mxu0 0.0
    %320 = vmatprep.subr.mxu0 0.0
    %321 = vmatpush1.msra.mxu0 0.0
    %322 = vmatprep.subr.mxu0 0.0
    %323 = vmatpush1.msra.mxu0 0.0
    %324 = vmatprep.subr.mxu0 0.0
    %325 = vmatpush1.msra.mxu0 0.0
    %326 = vmatprep.subr.mxu0 0.0
    %327 = vmatpush1.msra.mxu0 0.0
    %328 = vmatprep.subr.mxu0 0.0
    %329 = vmatpush1.msra.mxu0 0.0
    %330 = vmatprep.subr.mxu0 0.0
    %331 = vmatpush1.msra.mxu0 0.0
    %332 = vmatprep.subr.mxu0 0.0
    %333 = vmatpush1.msra.mxu0 0.0
    %334 = vmatprep.subr.mxu0 0.0
    %335 = vmatpush1.msra.mxu0 0.0
    %336 = vmatprep.mubr.f32.mxu0 0.0
    %337 = vmatmul.mubr.f32.gmra.mrb[0].mxu0 %v247
    %v338 = vpop.f32.mrb[0].mxu0
    %v339 = vadd.f32 %v270, %v338
    %v340 = vpop.f32.mrb[0].mxu0
    %341 = vmatprep.mubr.f32.mxu0 0.0
    %342 = vmatmul.mubr.f32.gmra.mrb[0].mxu0 %v248
    %v343 = vpop.f32.mrb[0].mxu0
    %v344 = vadd.f32 %v270, %v343
    %v345 = vpop.f32.mrb[0].mxu0
    %346 = vdwg.mxu0
    %347 = vst [vmem:[%s7] sm:$0xff] %v339
    %348 = vst [vmem:[%s7 + $0x8] sm:$0xff] %v344
    // Predicated region
    $region38: #{policy_forward.1} parent=1 // pred_check
      _
    $region39: #{policy_forward.1} parent=1 // pred_check_branch
      %350 = sbr.rel (0) target = $region41
    $region40: #{policy_forward.1} parent=1 // pred_region
      _
    $region41: #{policy_forward.1} parent=1 // pred_fallthru
      _
    // Predicated region
    $region42: #{policy_forward.1} parent=1 // pred_check
      _
    $region43: #{policy_forward.1} parent=1 // pred_check_branch
      %352 = sbr.rel (0) target = $region45
    $region44: #{policy_forward.1} parent=1 // pred_region
      _
    $region45: #{policy_forward.1} parent=1 // pred_fallthru
      _
    %353 = vsyncpa [#allocation3], 1
    %354 = vsyncpa [#allocation5], 1

</llo_original>
